<compile_context>
chip_gen: v6e
topology: v6e:2x2x1
jax: 0.10.0
libtpu: 0.0.40
codegen_flags: <defaults>
</compile_context>

<pallas_src>
import functools

import jax
import jax.numpy as jnp
from jax.experimental import pallas as pl
from jax.experimental.pallas import tpu as pltpu

_LANE = 128  # lane width


def _round_up(n, m):
    return ((n + m - 1) // m) * m


def _vmem_specs(n):
    return [pl.BlockSpec(memory_space=pltpu.MemorySpace.VMEM) for _ in range(n)]


# ---------------------------------------------------------------------------
# Pallas kernels
# ---------------------------------------------------------------------------
def _embed_kernel(x_ref, w1_ref, b1_ref, w2_ref, b2_ref, o_ref):
    """Embedding-net stand-in (build time only): bf16-operand ReLU MLP."""
    x = x_ref[...].astype(jnp.bfloat16)
    h = jnp.dot(x, w1_ref[...], preferred_element_type=jnp.float32) + b1_ref[...]
    h = jnp.maximum(h, 0.0)
    e = jnp.dot(h.astype(jnp.bfloat16), w2_ref[...],
                preferred_element_type=jnp.float32) + b2_ref[...]
    o_ref[...] = e


def _fsc_folded_kernel(x_ref, w1_ref, w2n_ref, bias_ref, o_ref, *, hdim, cp):
    """Fused forward with the cosine head folded into layer 2.

    x_ref    : (B, F)   f32  (cast to bf16 in-kernel)
    w1_ref   : (F, H)   bf16
    w2n_ref  : (H, Cp)  bf16  == W2 @ normalized(classifier_w).T, lane-padded
    bias_ref : (2, bw)  f32   row 0 = b1, row 1 = b2 @ Wn^T + b_c
    o_ref    : (B, Cp)  f32   (caller slices to (B, C))
    """
    xb = x_ref[...].astype(jnp.bfloat16)
    h = jnp.dot(xb, w1_ref[...], preferred_element_type=jnp.float32)
    h = jnp.maximum(h + bias_ref[0:1, :hdim], 0.0)
    logits = jnp.dot(h.astype(jnp.bfloat16), w2n_ref[...],
                     preferred_element_type=jnp.float32) + bias_ref[1:2, :cp]
    o_ref[...] = logits


# ---------------------------------------------------------------------------
# Wrappers (small shapes -> whole arrays live in VMEM, no grid needed)
# ---------------------------------------------------------------------------
@jax.jit
def embedding_net(x_nchw, w1, b1, w2, b2):
    """x_nchw: (N, C, H, W) f32 -> (N, E) f32. Used once at build time."""
    N = x_nchw.shape[0]
    E = w2.shape[1]
    x = x_nchw.reshape(N, -1)
    return pl.pallas_call(
        _embed_kernel,
        out_shape=jax.ShapeDtypeStruct((N, E), jnp.float32),
        in_specs=_vmem_specs(5),
        out_specs=pl.BlockSpec(memory_space=pltpu.MemorySpace.VMEM),
    )(x, w1, b1.reshape(1, -1), w2, b2.reshape(1, -1))


@jax.jit
def fsc_predictor_forward(x_nchw, params):
    """Equivalent of FSCPredictor._forward_impl: one fused pallas_call.

    Per-call wrapper work is just a free reshape and the final [:, :C] slice;
    all head prep lives in build_params/_prepare_head.
    """
    w1 = params["w1"]                      # (F, H)  bf16
    w2n = params["w2n"]                    # (H, Cp) bf16
    bias_pack = params["bias_pack"]        # (2, bw) f32
    C = params["softmax_classifier_w"].shape[0]

    B = x_nchw.shape[0]
    F, H = w1.shape
    Cp = w2n.shape[1]

    x = x_nchw.reshape(B, -1)              # contiguous NCHW -> (B, F): free view

    flops = 2 * B * F * H + 2 * B * H * Cp
    bytes_accessed = (x.size * 4 + w1.size * 2 + w2n.size * 2
                      + bias_pack.size * 4 + B * Cp * 4)

    out = pl.pallas_call(
        functools.partial(_fsc_folded_kernel, hdim=H, cp=Cp),
        out_shape=jax.ShapeDtypeStruct((B, Cp), jnp.float32),
        in_specs=_vmem_specs(4),
        out_specs=pl.BlockSpec(memory_space=pltpu.MemorySpace.VMEM),
        cost_estimate=pl.CostEstimate(flops=flops, transcendentals=0,
                                      bytes_accessed=bytes_accessed),
    )(x, w1, w2n, bias_pack)
    return out[:, :C]


# ---------------------------------------------------------------------------
# One-time, query-invariant head preparation (hoisted out of the forward)
# ---------------------------------------------------------------------------
def _prepare_head(p):
    """Row-normalize prototypes, transpose, lane-pad, and fold into layer 2."""
    cw = p["softmax_classifier_w"]                    # (C, E) f32
    cb = p["softmax_classifier_b"]                    # (C,)   f32
    w2, b2, b1 = p["w2"], p["b2"], p["b1"]
    C, E = cw.shape
    H = w2.shape[0]
    Cp = _round_up(max(C, _LANE), _LANE)

    # NOTE: like the PyTorch module, an all-zero prototype row divides by zero.
    inv_norm = jax.lax.rsqrt(jnp.sum(cw * cw, axis=1, keepdims=True))
    wn_t = (cw * inv_norm).T                          # (E, C)  f32
    wn_t = jnp.pad(wn_t, ((0, 0), (0, Cp - C)))       # (E, Cp)

    # Fold: emb @ Wn^T == (h @ W2 + b2) @ Wn^T == h @ (W2 @ Wn^T) + b2 @ Wn^T
    w2n = (w2.astype(jnp.float32) @ wn_t).astype(jnp.bfloat16)   # (H, Cp)
    bcn = b2 @ wn_t + jnp.pad(cb, (0, Cp - C))                   # (Cp,)

    bw = _round_up(max(H, Cp), _LANE)
    bias_pack = jnp.stack([jnp.pad(b1, (0, bw - H)),
                           jnp.pad(bcn, (0, bw - Cp))]).astype(jnp.float32)
    return {"w2n": w2n, "bias_pack": bias_pack}


# ---------------------------------------------------------------------------
# Deterministic parameter / support-set construction (mirrors __init__)
# ---------------------------------------------------------------------------
def build_params(key, *, C_in=3, H=16, W=16, hidden=128, emb_dim=128,
                 num_classes=4, shots=3):
    F = C_in * H * W
    k1, k2, k3 = jax.random.split(key, 3)
    w1 = (jax.random.normal(k1, (F, hidden), jnp.float32) * 0.05).astype(jnp.bfloat16)
    b1 = jnp.zeros((hidden,), jnp.float32)
    w2 = (jax.random.normal(k2, (hidden, emb_dim), jnp.float32) * 0.05).astype(jnp.bfloat16)
    b2 = jnp.zeros((emb_dim,), jnp.float32)

    # support_set: embed ALL shots*num_classes images in one kernel launch,
    # then per-class mean (matrix_m).
    support = jax.random.normal(k3, (num_classes * shots, C_in, H, W), jnp.float32)
    class_embs = embedding_net(support, w1, b1, w2, b2)          # (nc*shots, E)
    matrix_m = class_embs.reshape(num_classes, shots, emb_dim).mean(axis=1)

    params = {
        "w1": w1, "b1": b1, "w2": w2, "b2": b2,
        "softmax_classifier_w": matrix_m.astype(jnp.float32),
        "softmax_classifier_b": jnp.zeros((num_classes,), jnp.float32),
    }
    params.update(_prepare_head(params))
    return params


# ---------------------------------------------------------------------------
# Plain-JAX references
# ---------------------------------------------------------------------------
def reference_forward(x_nchw, p):
    """Original module math: embedding_net(x), then f32-head cosine classifier."""
    x = x_nchw.reshape(x_nchw.shape[0], -1).astype(jnp.bfloat16)
    h = jnp.maximum(
        jnp.dot(x, p["w1"], preferred_element_type=jnp.float32) + p["b1"], 0.0)
    emb = jnp.dot(h.astype(jnp.bfloat16), p["w2"],
                  preferred_element_type=jnp.float32) + p["b2"]
    w = p["softmax_classifier_w"]
    normed_w = w / jnp.linalg.norm(w, axis=1, keepdims=True)
    return emb @ normed_w.T + p["softmax_classifier_b"]


def reference_forward_folded(x_nchw, p):
    """Exact contract of the fused kernel (folded head, bf16 MXU operands)."""
    C = p["softmax_classifier_w"].shape[0]
    H = p["w1"].shape[1]
    Cp = p["w2n"].shape[1]
    x = x_nchw.reshape(x_nchw.shape[0], -1).astype(jnp.bfloat16)
    h = jnp.maximum(jnp.dot(x, p["w1"], preferred_element_type=jnp.float32)
                    + p["bias_pack"][0:1, :H], 0.0)
    logits = jnp.dot(h.astype(jnp.bfloat16), p["w2n"],
                     preferred_element_type=jnp.float32) + p["bias_pack"][1:2, :Cp]
    return logits[:, :C]


if __name__ == "__main__":
    key = jax.random.PRNGKey(0)
    k_params, k_x = jax.random.split(key)

    params = build_params(k_params)

    # query batch: (B=2, C=3, H=16, W=16) NCHW
    x = jax.random.normal(k_x, (2, 3, 16, 16), jnp.float32)

    out = jax.block_until_ready(fsc_predictor_forward(x, params))

    C = params["softmax_classifier_w"].shape[0]
    assert out.shape == (2, C)

    # Tight check: kernel vs a reference with the identical folded/bf16 contract.
    ref_folded = reference_forward_folded(x, params)
    assert jnp.allclose(out, ref_folded, atol=2e-3, rtol=2e-3), \
        "mismatch vs folded-contract reference"

    # Semantic check: kernel vs the original (unfolded, f32-head) module math.
    # Tolerance loosened for the bf16 rounding of the folded W2n weight.
    ref = reference_forward(x, params)
    assert jnp.allclose(out, ref, atol=5e-2, rtol=2e-2), \
        "mismatch vs original-module reference"

    print("KERNEL_OK")
</pallas_src>

<mosaic_0001>
module attributes {stable_mosaic.version = 11 : i64} {
  func.func @_embed_kernel(%arg0: memref<12x768xf32, #tpu.memory_space<vmem>>, %arg1: memref<768x128xbf16, #tpu.memory_space<vmem>>, %arg2: memref<1x128xf32, #tpu.memory_space<vmem>>, %arg3: memref<128x128xbf16, #tpu.memory_space<vmem>>, %arg4: memref<1x128xf32, #tpu.memory_space<vmem>>, %arg5: memref<12x128xf32, #tpu.memory_space<vmem>>) attributes {dimension_semantics = [], scalar_prefetch = 0 : i64, scratch_operands = 0 : i64, tpu.core_type = #tpu.core_type<tc>} {
    %c0 = arith.constant 0 : index
    %c0_0 = arith.constant 0 : index
    %0 = vector.load %arg0[%c0, %c0_0] : memref<12x768xf32, #tpu.memory_space<vmem>>, vector<12x768xf32>
    %1 = arith.truncf %0 : vector<12x768xf32> to vector<12x768xbf16>
    %c0_1 = arith.constant 0 : index
    %c0_2 = arith.constant 0 : index
    %2 = vector.load %arg1[%c0_1, %c0_2] : memref<768x128xbf16, #tpu.memory_space<vmem>>, vector<768x128xbf16>
    %cst = arith.constant dense<0.000000e+00> : vector<12x128xf32>
    %3 = tpu.matmul %1, %2, %cst {dimension_numbers = #tpu.dot_dimension_numbers<[1], [0], [0], [1], [0, 0, 1, 1], [], []>} : vector<12x768xbf16>, vector<768x128xbf16>, vector<12x128xf32> -> vector<12x128xf32>
    %c0_3 = arith.constant 0 : index
    %c0_4 = arith.constant 0 : index
    %4 = vector.load %arg2[%c0_3, %c0_4] : memref<1x128xf32, #tpu.memory_space<vmem>>, vector<1x128xf32>
    %5 = vector.broadcast %4 : vector<1x128xf32> to vector<12x128xf32>
    %6 = arith.addf %3, %5 : vector<12x128xf32>
    %cst_5 = arith.constant 0.000000e+00 : f32
    %7 = vector.broadcast %cst_5 : f32 to vector<12x128xf32>
    %8 = arith.maximumf %6, %7 : vector<12x128xf32>
    %9 = arith.truncf %8 : vector<12x128xf32> to vector<12x128xbf16>
    %c0_6 = arith.constant 0 : index
    %c0_7 = arith.constant 0 : index
    %10 = vector.load %arg3[%c0_6, %c0_7] : memref<128x128xbf16, #tpu.memory_space<vmem>>, vector<128x128xbf16>
    %cst_8 = arith.constant dense<0.000000e+00> : vector<12x128xf32>
    %11 = tpu.matmul %9, %10, %cst_8 {dimension_numbers = #tpu.dot_dimension_numbers<[1], [0], [0], [1], [0, 0, 1, 1], [], []>} : vector<12x128xbf16>, vector<128x128xbf16>, vector<12x128xf32> -> vector<12x128xf32>
    %c0_9 = arith.constant 0 : index
    %c0_10 = arith.constant 0 : index
    %12 = vector.load %arg4[%c0_9, %c0_10] : memref<1x128xf32, #tpu.memory_space<vmem>>, vector<1x128xf32>
    %13 = vector.broadcast %12 : vector<1x128xf32> to vector<12x128xf32>
    %14 = arith.addf %11, %13 : vector<12x128xf32>
    %c0_11 = arith.constant 0 : index
    %c0_12 = arith.constant 0 : index
    %15 = vector.load %arg5[%c0_11, %c0_12] : memref<12x128xf32, #tpu.memory_space<vmem>>, vector<12x128xf32>
    tpu.vector_store %arg5[%c0_11, %c0_12], %14 {strides = array<i32>} : memref<12x128xf32, #tpu.memory_space<vmem>>, vector<12x128xf32>,
    return
  }
}

</mosaic_0001>

<llo_original>
// kernel: embedding_net.1
$region0: #{embedding_net.1}
  #allocation0 [shape = 'u32[]', space=smem, size = 0x4, offset = 0x4, fixed_abs, tag = 'smem constant byte address 0x4 - core index']
  #allocation1 [shape = 'u32[144,128]{1,0:T(1,128)}', space=vmem, size = 0x12000, scoped, tag = 'internal scratch']
  %s0 = inlined_call_operand.vmem [shape: f32[12,768], index: 0, kind: input, shape index: {}]
  %s1 = inlined_call_operand.vmem [shape: bf16[768,128], index: 1, kind: input, shape index: {}]
  %s2 = inlined_call_operand.vmem [shape: f32[1,128], index: 2, kind: input, shape index: {}]
  %s3 = inlined_call_operand.vmem [shape: bf16[128,128], index: 3, kind: input, shape index: {}]
  %s4 = inlined_call_operand.vmem [shape: f32[1,128], index: 4, kind: input, shape index: {}]
  %s5 = inlined_call_operand.hbm [shape: f32[12,128], index: 5, kind: output, shape index: {}]
  %s6 = sld [smem:[#allocation0]]
  $region30: #{embedding_net.1} parent=0
    _
  %s8 = ssub.s32 1, %s6
  %s9 = scalar_select 0, %s8, %s6
  $region1: #{embedding_net.1} parent=0
    #allocation2 [shape = 'u8[8192]{0}', space=vmem, size = 0x2000, scoped, tag = 'output window, operand 0, single buffered']
    #allocation3 [shape = 's32[1]{0}', space=sflag, size = 0x4, scoped, tag = 'scoped memory for embedding_net.1']
    %10 = vsyncpa [#allocation3], 0
    // Predicated region
    $region2: #{embedding_net.1} parent=1 // pred_check
      _
    $region3: #{embedding_net.1} parent=1 // pred_check_branch
      %12 = sbr.rel (0) target = $region5
    $region4: #{embedding_net.1} parent=1 // pred_region
      _
    $region5: #{embedding_net.1} parent=1 // pred_fallthru
      _
    // Predicated region
    $region6: #{embedding_net.1} parent=1 // pred_check
      _
    $region7: #{embedding_net.1} parent=1 // pred_check_branch
      %14 = sbr.rel (0) target = $region9
    $region8: #{embedding_net.1} parent=1 // pred_region
      _
    $region9: #{embedding_net.1} parent=1 // pred_fallthru
      _
    // Predicated region
    $region10: #{embedding_net.1} parent=1 // pred_check
      _
    $region11: #{embedding_net.1} parent=1 // pred_check_branch
      %16 = sbr.rel (0) target = $region13
    $region12: #{embedding_net.1} parent=1 // pred_region
      _
    $region13: #{embedding_net.1} parent=1 // pred_fallthru
      _
    // Predicated region
    $region14: #{embedding_net.1} parent=1 // pred_check
      _
    $region15: #{embedding_net.1} parent=1 // pred_check_branch
      %18 = sbr.rel (0) target = $region17
    $region16: #{embedding_net.1} parent=1 // pred_region
      _
    $region17: #{embedding_net.1} parent=1 // pred_fallthru
      _
    // Predicated region
    $region18: #{embedding_net.1} parent=1 // pred_check
      _
    $region19: #{embedding_net.1} parent=1 // pred_check_branch
      %20 = sbr.rel (0) target = $region21
    $region20: #{embedding_net.1} parent=1 // pred_region
      _
    $region21: #{embedding_net.1} parent=1 // pred_fallthru
      _
    %v22 = vld [vmem:[%s0] sm:$0xff]
    %v23 = vld [vmem:[%s0 + $0x8] sm:$0xff]
    %v24 = vld [vmem:[%s0 + $0x10] sm:$0xff]
    %v25 = vld [vmem:[%s0 + $0x18] sm:$0xff]
    %v26 = vld [vmem:[%s0 + $0x20] sm:$0xff]
    %v27 = vld [vmem:[%s0 + $0x28] sm:$0xff]
    %v28 = vld [vmem:[%s0 + $0x30] sm:$0xf]
    %v29 = vld [vmem:[%s0 + $0x38] sm:$0xf]
    %v30 = vld [vmem:[%s0 + $0x40] sm:$0xf]
    %v31 = vld [vmem:[%s0 + $0x48] sm:$0xf]
    %v32 = vld [vmem:[%s0 + $0x50] sm:$0xf]
    %v33 = vld [vmem:[%s0 + $0x58] sm:$0xf]
    %v34 = vpack.c.bf16 %v28, %v22
    %v35 = vpack.c.bf16 %v29, %v23
    %v36 = vpack.c.bf16 %v30, %v24
    %v37 = vpack.c.bf16 %v31, %v25
    %v38 = vpack.c.bf16 %v32, %v26
    %v39 = vpack.c.bf16 %v33, %v27
    %v40 = vld [vmem:[%s1] sm:$0xf]
    %v41 = vld [vmem:[%s1 + $0x4] sm:$0xf]
    %v42 = vld [vmem:[%s1 + $0x8] sm:$0xf]
    %v43 = vld [vmem:[%s1 + $0xc] sm:$0xf]
    %v44 = vld [vmem:[%s1 + $0x10] sm:$0xf]
    %v45 = vld [vmem:[%s1 + $0x14] sm:$0xf]
    %v46 = vld [vmem:[%s1 + $0x18] sm:$0xf]
    %v47 = vld [vmem:[%s1 + $0x1c] sm:$0xf]
    %v48 = vld [vmem:[%s1 + $0x20] sm:$0xf]
    %v49 = vld [vmem:[%s1 + $0x24] sm:$0xf]
    %v50 = vld [vmem:[%s1 + $0x28] sm:$0xf]
    %v51 = vld [vmem:[%s1 + $0x2c] sm:$0xf]
    %v52 = vld [vmem:[%s1 + $0x30] sm:$0xf]
    %v53 = vld [vmem:[%s1 + $0x34] sm:$0xf]
    %v54 = vld [vmem:[%s1 + $0x38] sm:$0xf]
    %v55 = vld [vmem:[%s1 + $0x3c] sm:$0xf]
    %v56 = vld [vmem:[%s1 + $0x40] sm:$0xf]
    %v57 = vld [vmem:[%s1 + $0x44] sm:$0xf]
    %v58 = vld [vmem:[%s1 + $0x48] sm:$0xf]
    %v59 = vld [vmem:[%s1 + $0x4c] sm:$0xf]
    %v60 = vld [vmem:[%s1 + $0x50] sm:$0xf]
    %v61 = vld [vmem:[%s1 + $0x54] sm:$0xf]
    %v62 = vld [vmem:[%s1 + $0x58] sm:$0xf]
    %v63 = vld [vmem:[%s1 + $0x5c] sm:$0xf]
    %v64 = vld [vmem:[%s1 + $0x60] sm:$0xf]
    %v65 = vld [vmem:[%s1 + $0x64] sm:$0xf]
    %v66 = vld [vmem:[%s1 + $0x68] sm:$0xf]
    %v67 = vld [vmem:[%s1 + $0x6c] sm:$0xf]
    %v68 = vld [vmem:[%s1 + $0x70] sm:$0xf]
    %v69 = vld [vmem:[%s1 + $0x74] sm:$0xf]
    %v70 = vld [vmem:[%s1 + $0x78] sm:$0xf]
    %v71 = vld [vmem:[%s1 + $0x7c] sm:$0xf]
    %v72 = vld [vmem:[%s1 + $0x80] sm:$0xf]
    %v73 = vld [vmem:[%s1 + $0x84] sm:$0xf]
    %v74 = vld [vmem:[%s1 + $0x88] sm:$0xf]
    %v75 = vld [vmem:[%s1 + $0x8c] sm:$0xf]
    %v76 = vld [vmem:[%s1 + $0x90] sm:$0xf]
    %v77 = vld [vmem:[%s1 + $0x94] sm:$0xf]
    %v78 = vld [vmem:[%s1 + $0x98] sm:$0xf]
    %v79 = vld [vmem:[%s1 + $0x9c] sm:$0xf]
    %v80 = vld [vmem:[%s1 + $0xa0] sm:$0xf]
    %v81 = vld [vmem:[%s1 + $0xa4] sm:$0xf]
    %v82 = vld [vmem:[%s1 + $0xa8] sm:$0xf]
    %v83 = vld [vmem:[%s1 + $0xac] sm:$0xf]
    %v84 = vld [vmem:[%s1 + $0xb0] sm:$0xf]
    %v85 = vld [vmem:[%s1 + $0xb4] sm:$0xf]
    %v86 = vld [vmem:[%s1 + $0xb8] sm:$0xf]
    %v87 = vld [vmem:[%s1 + $0xbc] sm:$0xf]
    %v88 = vld [vmem:[%s1 + $0xc0] sm:$0xf]
    %v89 = vld [vmem:[%s1 + $0xc4] sm:$0xf]
    %v90 = vld [vmem:[%s1 + $0xc8] sm:$0xf]
    %v91 = vld [vmem:[%s1 + $0xcc] sm:$0xf]
    %v92 = vld [vmem:[%s1 + $0xd0] sm:$0xf]
    %v93 = vld [vmem:[%s1 + $0xd4] sm:$0xf]
    %v94 = vld [vmem:[%s1 + $0xd8] sm:$0xf]
    %v95 = vld [vmem:[%s1 + $0xdc] sm:$0xf]
    %v96 = vld [vmem:[%s1 + $0xe0] sm:$0xf]
    %v97 = vld [vmem:[%s1 + $0xe4] sm:$0xf]
    %v98 = vld [vmem:[%s1 + $0xe8] sm:$0xf]
    %v99 = vld [vmem:[%s1 + $0xec] sm:$0xf]
    %v100 = vld [vmem:[%s1 + $0xf0] sm:$0xf]
    %v101 = vld [vmem:[%s1 + $0xf4] sm:$0xf]
    %v102 = vld [vmem:[%s1 + $0xf8] sm:$0xf]
    %v103 = vld [vmem:[%s1 + $0xfc] sm:$0xf]
    %v104 = vld [vmem:[%s1 + $0x100] sm:$0xf]
    %v105 = vld [vmem:[%s1 + $0x104] sm:$0xf]
    %v106 = vld [vmem:[%s1 + $0x108] sm:$0xf]
    %v107 = vld [vmem:[%s1 + $0x10c] sm:$0xf]
    %v108 = vld [vmem:[%s1 + $0x110] sm:$0xf]
    %v109 = vld [vmem:[%s1 + $0x114] sm:$0xf]
    %v110 = vld [vmem:[%s1 + $0x118] sm:$0xf]
    %v111 = vld [vmem:[%s1 + $0x11c] sm:$0xf]
    %v112 = vld [vmem:[%s1 + $0x120] sm:$0xf]
    %v113 = vld [vmem:[%s1 + $0x124] sm:$0xf]
    %v114 = vld [vmem:[%s1 + $0x128] sm:$0xf]
    %v115 = vld [vmem:[%s1 + $0x12c] sm:$0xf]
    %v116 = vld [vmem:[%s1 + $0x130] sm:$0xf]
    %v117 = vld [vmem:[%s1 + $0x134] sm:$0xf]
    %v118 = vld [vmem:[%s1 + $0x138] sm:$0xf]
    %v119 = vld [vmem:[%s1 + $0x13c] sm:$0xf]
    %v120 = vld [vmem:[%s1 + $0x140] sm:$0xf]
    %v121 = vld [vmem:[%s1 + $0x144] sm:$0xf]
    %v122 = vld [vmem:[%s1 + $0x148] sm:$0xf]
    %v123 = vld [vmem:[%s1 + $0x14c] sm:$0xf]
    %v124 = vld [vmem:[%s1 + $0x150] sm:$0xf]
    %v125 = vld [vmem:[%s1 + $0x154] sm:$0xf]
    %v126 = vld [vmem:[%s1 + $0x158] sm:$0xf]
    %v127 = vld [vmem:[%s1 + $0x15c] sm:$0xf]
    %v128 = vld [vmem:[%s1 + $0x160] sm:$0xf]
    %v129 = vld [vmem:[%s1 + $0x164] sm:$0xf]
    %v130 = vld [vmem:[%s1 + $0x168] sm:$0xf]
    %v131 = vld [vmem:[%s1 + $0x16c] sm:$0xf]
    %v132 = vld [vmem:[%s1 + $0x170] sm:$0xf]
    %v133 = vld [vmem:[%s1 + $0x174] sm:$0xf]
    %v134 = vld [vmem:[%s1 + $0x178] sm:$0xf]
    %v135 = vld [vmem:[%s1 + $0x17c] sm:$0xf]
    %v136 = vld [vmem:[%s2] sm:$0x1]
    %v138 = vlaneseq
    %v139 = vshrl.u32 %v138, 7
    %v140 = vsub.s32 0, %v139
    %v141 = vrot.slane %v136, %v140
    %v239 = vunpack.c.l.b16 %v40
    %v240 = vunpack.c.l.b16 %v41
    %v241 = vunpack.c.l.b16 %v42
    %v242 = vunpack.c.l.b16 %v43
    %v243 = vunpack.c.l.b16 %v44
    %v244 = vunpack.c.l.b16 %v45
    %v245 = vunpack.c.l.b16 %v46
    %v246 = vunpack.c.l.b16 %v47
    %v247 = vunpack.c.l.b16 %v48
    %v248 = vunpack.c.l.b16 %v49
    %v249 = vunpack.c.l.b16 %v50
    %v250 = vunpack.c.l.b16 %v51
    %v251 = vunpack.c.l.b16 %v52
    %v252 = vunpack.c.l.b16 %v53
    %v253 = vunpack.c.l.b16 %v54
    %v254 = vunpack.c.l.b16 %v55
    %v255 = vunpack.c.l.b16 %v56
    %v256 = vunpack.c.l.b16 %v57
    %v257 = vunpack.c.l.b16 %v58
    %v258 = vunpack.c.l.b16 %v59
    %v259 = vunpack.c.l.b16 %v60
    %v260 = vunpack.c.l.b16 %v61
    %v261 = vunpack.c.l.b16 %v62
    %v262 = vunpack.c.l.b16 %v63
    %v263 = vunpack.c.l.b16 %v64
    %v264 = vunpack.c.l.b16 %v65
    %v265 = vunpack.c.l.b16 %v66
    %v266 = vunpack.c.l.b16 %v67
    %v267 = vunpack.c.l.b16 %v68
    %v268 = vunpack.c.l.b16 %v69
    %v269 = vunpack.c.l.b16 %v70
    %v270 = vunpack.c.l.b16 %v71
    %v271 = vunpack.c.l.b16 %v72
    %v272 = vunpack.c.l.b16 %v73
    %v273 = vunpack.c.l.b16 %v74
    %v274 = vunpack.c.l.b16 %v75
    %v275 = vunpack.c.l.b16 %v76
    %v276 = vunpack.c.l.b16 %v77
    %v277 = vunpack.c.l.b16 %v78
    %v278 = vunpack.c.l.b16 %v79
    %v279 = vunpack.c.l.b16 %v80
    %v280 = vunpack.c.l.b16 %v81
    %v281 = vunpack.c.l.b16 %v82
    %v282 = vunpack.c.l.b16 %v83
    %v283 = vunpack.c.l.b16 %v84
    %v284 = vunpack.c.l.b16 %v85
    %v285 = vunpack.c.l.b16 %v86
    %v286 = vunpack.c.l.b16 %v87
    %v287 = vunpack.c.l.b16 %v88
    %v288 = vunpack.c.l.b16 %v89
    %v289 = vunpack.c.l.b16 %v90
    %v290 = vunpack.c.l.b16 %v91
    %v291 = vunpack.c.l.b16 %v92
    %v292 = vunpack.c.l.b16 %v93
    %v293 = vunpack.c.l.b16 %v94
    %v294 = vunpack.c.l.b16 %v95
    %v295 = vunpack.c.l.b16 %v96
    %v296 = vunpack.c.l.b16 %v97
    %v297 = vunpack.c.l.b16 %v98
    %v298 = vunpack.c.l.b16 %v99
    %v299 = vunpack.c.l.b16 %v100
    %v300 = vunpack.c.l.b16 %v101
    %v301 = vunpack.c.l.b16 %v102
    %v302 = vunpack.c.l.b16 %v103
    %v303 = vunpack.c.l.b16 %v104
    %v304 = vunpack.c.l.b16 %v105
    %v305 = vunpack.c.l.b16 %v106
    %v306 = vunpack.c.l.b16 %v107
    %v307 = vunpack.c.l.b16 %v108
    %v308 = vunpack.c.l.b16 %v109
    %v309 = vunpack.c.l.b16 %v110
    %v310 = vunpack.c.l.b16 %v111
    %v311 = vunpack.c.l.b16 %v112
    %v312 = vunpack.c.l.b16 %v113
    %v313 = vunpack.c.l.b16 %v114
    %v314 = vunpack.c.l.b16 %v115
    %v315 = vunpack.c.l.b16 %v116
    %v316 = vunpack.c.l.b16 %v117
    %v317 = vunpack.c.l.b16 %v118
    %v318 = vunpack.c.l.b16 %v119
    %v319 = vunpack.c.l.b16 %v120
    %v320 = vunpack.c.l.b16 %v121
    %v321 = vunpack.c.l.b16 %v122
    %v322 = vunpack.c.l.b16 %v123
    %v323 = vunpack.c.l.b16 %v124
    %v324 = vunpack.c.l.b16 %v125
    %v325 = vunpack.c.l.b16 %v126
    %v326 = vunpack.c.l.b16 %v127
    %v327 = vunpack.c.l.b16 %v128
    %v328 = vunpack.c.l.b16 %v129
    %v329 = vunpack.c.l.b16 %v130
    %v330 = vunpack.c.l.b16 %v131
    %v331 = vunpack.c.l.b16 %v132
    %v332 = vunpack.c.l.b16 %v133
    %v333 = vunpack.c.l.b16 %v134
    %v334 = vunpack.c.l.b16 %v135
    %v335 = vpack.c.b16 %v240, %v239
    %v336 = vpack.c.b16 %v242, %v241
    %v337 = vpack.c.b16 %v244, %v243
    %v338 = vpack.c.b16 %v246, %v245
    %v339 = vpack.c.b16 %v248, %v247
    %v340 = vpack.c.b16 %v250, %v249
    %v341 = vpack.c.b16 %v252, %v251
    %v342 = vpack.c.b16 %v254, %v253
    %v343 = vpack.c.b16 %v256, %v255
    %v344 = vpack.c.b16 %v258, %v257
    %v345 = vpack.c.b16 %v260, %v259
    %v346 = vpack.c.b16 %v262, %v261
    %v347 = vpack.c.b16 %v264, %v263
    %v348 = vpack.c.b16 %v266, %v265
    %v349 = vpack.c.b16 %v268, %v267
    %v350 = vpack.c.b16 %v270, %v269
    %v351 = vpack.c.b16 %v272, %v271
    %v352 = vpack.c.b16 %v274, %v273
    %v353 = vpack.c.b16 %v276, %v275
    %v354 = vpack.c.b16 %v278, %v277
    %v355 = vpack.c.b16 %v280, %v279
    %v356 = vpack.c.b16 %v282, %v281
    %v357 = vpack.c.b16 %v284, %v283
    %v358 = vpack.c.b16 %v286, %v285
    %v359 = vpack.c.b16 %v288, %v287
    %v360 = vpack.c.b16 %v290, %v289
    %v361 = vpack.c.b16 %v292, %v291
    %v362 = vpack.c.b16 %v294, %v293
    %v363 = vpack.c.b16 %v296, %v295
    %v364 = vpack.c.b16 %v298, %v297
    %v365 = vpack.c.b16 %v300, %v299
    %v366 = vpack.c.b16 %v302, %v301
    %v367 = vpack.c.b16 %v304, %v303
    %v368 = vpack.c.b16 %v306, %v305
    %v369 = vpack.c.b16 %v308, %v307
    %v370 = vpack.c.b16 %v310, %v309
    %v371 = vpack.c.b16 %v312, %v311
    %v372 = vpack.c.b16 %v314, %v313
    %v373 = vpack.c.b16 %v316, %v315
    %v374 = vpack.c.b16 %v318, %v317
    %v375 = vpack.c.b16 %v320, %v319
    %v376 = vpack.c.b16 %v322, %v321
    %v377 = vpack.c.b16 %v324, %v323
    %v378 = vpack.c.b16 %v326, %v325
    %v379 = vpack.c.b16 %v328, %v327
    %v380 = vpack.c.b16 %v330, %v329
    %v381 = vpack.c.b16 %v332, %v331
    %v382 = vpack.c.b16 %v334, %v333
    %431 = vmatprep.subr.bf16.mxu0 0
    %432 = vmatpush1.bf16.msra.mxu0 %v342
    %433 = vmatprep.subr.bf16.mxu0 0
    %434 = vmatpush1.bf16.msra.mxu0 %v341
    %435 = vmatprep.subr.bf16.mxu0 0
    %436 = vmatpush1.bf16.msra.mxu0 %v340
    %437 = vmatprep.subr.bf16.mxu0 0
    %438 = vmatpush1.bf16.msra.mxu0 %v339
    %439 = vmatprep.subr.bf16.mxu0 0
    %440 = vmatpush1.bf16.msra.mxu0 %v338
    %441 = vmatprep.subr.bf16.mxu0 0
    %442 = vmatpush1.bf16.msra.mxu0 %v337
    %443 = vmatprep.subr.bf16.mxu0 0
    %444 = vmatpush1.bf16.msra.mxu0 %v336
    %445 = vmatprep.subr.bf16.mxu0 0
    %446 = vmatpush1.bf16.msra.mxu0 %v335
    %447 = vmatprep.subr.bf16.mxu0 0
    %448 = vmatpush2.bf16.msra.mxu0 %v350
    %449 = vmatprep.subr.bf16.mxu0 0
    %450 = vmatpush2.bf16.msra.mxu0 %v349
    %451 = vmatprep.subr.bf16.mxu0 0
    %452 = vmatpush2.bf16.msra.mxu0 %v348
    %453 = vmatprep.subr.bf16.mxu0 0
    %454 = vmatpush2.bf16.msra.mxu0 %v347
    %455 = vmatprep.subr.bf16.mxu0 0
    %456 = vmatpush2.bf16.msra.mxu0 %v346
    %457 = vmatprep.subr.bf16.mxu0 0
    %458 = vmatpush2.bf16.msra.mxu0 %v345
    %459 = vmatprep.subr.bf16.mxu0 0
    %460 = vmatpush2.bf16.msra.mxu0 %v344
    %461 = vmatprep.subr.bf16.mxu0 0
    %462 = vmatpush2.bf16.msra.mxu0 %v343
    %463 = vmatprep.mubr.bf16.mxu0 %v35
    %464 = vmatmul.mubr.bf16.gmra.mxu0 %v34
    %v465 = vpop.f32.mrf.mxu0
    %v466 = vadd.f32 %v141, %v465
    %v467 = vpop.f32.mrf.mxu0
    %v468 = vpop.f32.mrf.mxu0
    %v469 = vadd.f32 %v141, %v468
    %v470 = vpop.f32.mrf.mxu0
    %471 = vdwg.mxu0
    %472 = vmatprep.subr.bf16.mxu0 0
    %473 = vmatpush1.bf16.msra.mxu0 %v358
    %474 = vmatprep.subr.bf16.mxu0 0
    %475 = vmatpush1.bf16.msra.mxu0 %v357
    %476 = vmatprep.subr.bf16.mxu0 0
    %477 = vmatpush1.bf16.msra.mxu0 %v356
    %478 = vmatprep.subr.bf16.mxu0 0
    %479 = vmatpush1.bf16.msra.mxu0 %v355
    %480 = vmatprep.subr.bf16.mxu0 0
    %481 = vmatpush1.bf16.msra.mxu0 %v354
    %482 = vmatprep.subr.bf16.mxu0 0
    %483 = vmatpush1.bf16.msra.mxu0 %v353
    %484 = vmatprep.subr.bf16.mxu0 0
    %485 = vmatpush1.bf16.msra.mxu0 %v352
    %486 = vmatprep.subr.bf16.mxu0 0
    %487 = vmatpush1.bf16.msra.mxu0 %v351
    %488 = vmatprep.subr.bf16.mxu0 0
    %489 = vmatpush2.bf16.msra.mxu0 %v366
    %490 = vmatprep.subr.bf16.mxu0 0
    %491 = vmatpush2.bf16.msra.mxu0 %v365
    %492 = vmatprep.subr.bf16.mxu0 0
    %493 = vmatpush2.bf16.msra.mxu0 %v364
    %494 = vmatprep.subr.bf16.mxu0 0
    %495 = vmatpush2.bf16.msra.mxu0 %v363
    %496 = vmatprep.subr.bf16.mxu0 0
    %497 = vmatpush2.bf16.msra.mxu0 %v362
    %498 = vmatprep.subr.bf16.mxu0 0
    %499 = vmatpush2.bf16.msra.mxu0 %v361
    %500 = vmatprep.subr.bf16.mxu0 0
    %501 = vmatpush2.bf16.msra.mxu0 %v360
    %502 = vmatprep.subr.bf16.mxu0 0
    %503 = vmatpush2.bf16.msra.mxu0 %v359
    %504 = vmatprep.mubr.bf16.mxu0 %v37
    %505 = vmatmul.mubr.bf16.gmra.mxu0 %v36
    %v506 = vpop.f32.mrf.mxu0
    %v507 = vadd.f32 %v466, %v506
    %v508 = vpop.f32.mrf.mxu0
    %v509 = vpop.f32.mrf.mxu0
    %v510 = vadd.f32 %v469, %v509
    %v511 = vpop.f32.mrf.mxu0
    %512 = vdwg.mxu0
    %513 = vmatprep.subr.bf16.mxu0 0
    %514 = vmatpush1.bf16.msra.mxu0 %v374
    %515 = vmatprep.subr.bf16.mxu0 0
    %516 = vmatpush1.bf16.msra.mxu0 %v373
    %517 = vmatprep.subr.bf16.mxu0 0
    %518 = vmatpush1.bf16.msra.mxu0 %v372
    %519 = vmatprep.subr.bf16.mxu0 0
    %520 = vmatpush1.bf16.msra.mxu0 %v371
    %521 = vmatprep.subr.bf16.mxu0 0
    %522 = vmatpush1.bf16.msra.mxu0 %v370
    %523 = vmatprep.subr.bf16.mxu0 0
    %524 = vmatpush1.bf16.msra.mxu0 %v369
    %525 = vmatprep.subr.bf16.mxu0 0
    %526 = vmatpush1.bf16.msra.mxu0 %v368
    %527 = vmatprep.subr.bf16.mxu0 0
    %528 = vmatpush1.bf16.msra.mxu0 %v367
    %529 = vmatprep.subr.bf16.mxu0 0
    %530 = vmatpush2.bf16.msra.mxu0 %v382
    %531 = vmatprep.subr.bf16.mxu0 0
    %532 = vmatpush2.bf16.msra.mxu0 %v381
    %533 = vmatprep.subr.bf16.mxu0 0
    %534 = vmatpush2.bf16.msra.mxu0 %v380
    %535 = vmatprep.subr.bf16.mxu0 0
    %536 = vmatpush2.bf16.msra.mxu0 %v379
    %537 = vmatprep.subr.bf16.mxu0 0
    %538 = vmatpush2.bf16.msra.mxu0 %v378
    %539 = vmatprep.subr.bf16.mxu0 0
    %540 = vmatpush2.bf16.msra.mxu0 %v377
    %541 = vmatprep.subr.bf16.mxu0 0
    %542 = vmatpush2.bf16.msra.mxu0 %v376
    %543 = vmatprep.subr.bf16.mxu0 0
    %544 = vmatpush2.bf16.msra.mxu0 %v375
    %545 = vmatprep.mubr.bf16.mxu0 %v39
    %546 = vmatmul.mubr.bf16.gmra.mxu0 %v38
    %v547 = vpop.f32.mrf.mxu0
    %v548 = vadd.f32 %v507, %v547
    %v549 = vpop.f32.mrf.mxu0
    %v550 = vpop.f32.mrf.mxu0
    %v551 = vadd.f32 %v510, %v550
    %v552 = vpop.f32.mrf.mxu0
    %553 = vdwg.mxu0
    %v554 = vmax.f32 %v548, 0.0
    %v555 = vmax.f32 %v551, 0.0
    %v556 = vpack.c.bf16 %v555, %v554
    %v557 = vld [vmem:[%s3] sm:$0xf]
    %v558 = vld [vmem:[%s3 + $0x4] sm:$0xf]
    %v559 = vld [vmem:[%s3 + $0x8] sm:$0xf]
    %v560 = vld [vmem:[%s3 + $0xc] sm:$0xf]
    %v561 = vld [vmem:[%s3 + $0x10] sm:$0xf]
    %v562 = vld [vmem:[%s3 + $0x14] sm:$0xf]
    %v563 = vld [vmem:[%s3 + $0x18] sm:$0xf]
    %v564 = vld [vmem:[%s3 + $0x1c] sm:$0xf]
    %v565 = vld [vmem:[%s3 + $0x20] sm:$0xf]
    %v566 = vld [vmem:[%s3 + $0x24] sm:$0xf]
    %v567 = vld [vmem:[%s3 + $0x28] sm:$0xf]
    %v568 = vld [vmem:[%s3 + $0x2c] sm:$0xf]
    %v569 = vld [vmem:[%s3 + $0x30] sm:$0xf]
    %v570 = vld [vmem:[%s3 + $0x34] sm:$0xf]
    %v571 = vld [vmem:[%s3 + $0x38] sm:$0xf]
    %v572 = vld [vmem:[%s3 + $0x3c] sm:$0xf]
    %v573 = vld [vmem:[%s4] sm:$0x1]
    %v575 = vlaneseq
    %v576 = vshrl.u32 %v575, 7
    %v577 = vsub.s32 0, %v576
    %v578 = vrot.slane %v573, %v577
    %v596 = vunpack.c.l.b16 %v557
    %v597 = vunpack.c.l.b16 %v558
    %v598 = vunpack.c.l.b16 %v559
    %v599 = vunpack.c.l.b16 %v560
    %v600 = vunpack.c.l.b16 %v561
    %v601 = vunpack.c.l.b16 %v562
    %v602 = vunpack.c.l.b16 %v563
    %v603 = vunpack.c.l.b16 %v564
    %v604 = vunpack.c.l.b16 %v565
    %v605 = vunpack.c.l.b16 %v566
    %v606 = vunpack.c.l.b16 %v567
    %v607 = vunpack.c.l.b16 %v568
    %v608 = vunpack.c.l.b16 %v569
    %v609 = vunpack.c.l.b16 %v570
    %v610 = vunpack.c.l.b16 %v571
    %v611 = vunpack.c.l.b16 %v572
    %v612 = vpack.c.b16 %v597, %v596
    %v613 = vpack.c.b16 %v599, %v598
    %v614 = vpack.c.b16 %v601, %v600
    %v615 = vpack.c.b16 %v603, %v602
    %v616 = vpack.c.b16 %v605, %v604
    %v617 = vpack.c.b16 %v607, %v606
    %v618 = vpack.c.b16 %v609, %v608
    %v619 = vpack.c.b16 %v611, %v610
    %628 = vmatprep.subr.bf16.mxu0 0
    %629 = vmatpush1.bf16.msra.mxu0 %v619
    %630 = vmatprep.subr.bf16.mxu0 0
    %631 = vmatpush1.bf16.msra.mxu0 %v618
    %632 = vmatprep.subr.bf16.mxu0 0
    %633 = vmatpush1.bf16.msra.mxu0 %v617
    %634 = vmatprep.subr.bf16.mxu0 0
    %635 = vmatpush1.bf16.msra.mxu0 %v616
    %636 = vmatprep.subr.bf16.mxu0 0
    %637 = vmatpush1.bf16.msra.mxu0 %v615
    %638 = vmatprep.subr.bf16.mxu0 0
    %639 = vmatpush1.bf16.msra.mxu0 %v614
    %640 = vmatprep.subr.bf16.mxu0 0
    %641 = vmatpush1.bf16.msra.mxu0 %v613
    %642 = vmatprep.subr.bf16.mxu0 0
    %643 = vmatpush1.bf16.msra.mxu0 %v612
    %644 = vmatprep.subr.bf16.mxu0 0
    %645 = vmatpush2.bf16.msra.mxu0 0
    %646 = vmatprep.subr.bf16.mxu0 0
    %647 = vmatpush2.bf16.msra.mxu0 0
    %648 = vmatprep.subr.bf16.mxu0 0
    %649 = vmatpush2.bf16.msra.mxu0 0
    %650 = vmatprep.subr.bf16.mxu0 0
    %651 = vmatpush2.bf16.msra.mxu0 0
    %652 = vmatprep.subr.bf16.mxu0 0
    %653 = vmatpush2.bf16.msra.mxu0 0
    %654 = vmatprep.subr.bf16.mxu0 0
    %655 = vmatpush2.bf16.msra.mxu0 0
    %656 = vmatprep.subr.bf16.mxu0 0
    %657 = vmatpush2.bf16.msra.mxu0 0
    %658 = vmatprep.subr.bf16.mxu0 0
    %659 = vmatpush2.bf16.msra.mxu0 0
    %660 = vmatprep.mubr.bf16.mxu0 0
    %661 = vmatmul.mubr.bf16.gmra.mxu0 %v556
    %v662 = vpop.f32.mrf.mxu0
    %v663 = vadd.f32 %v578, %v662
    %v664 = vpop.f32.mrf.mxu0
    %v665 = vpop.f32.mrf.mxu0
    %v666 = vadd.f32 %v578, %v665
    %v667 = vpop.f32.mrf.mxu0
    %668 = vdwg.mxu0
    %669 = vst [vmem:[#allocation2] sm:$0xff] %v663
    %670 = vst [vmem:[#allocation2 + $0x8] sm:$0xf] %v666
    // Predicated region
    $region22: #{embedding_net.1} parent=1 // pred_check
      _
    $region23: #{embedding_net.1} parent=1 // pred_check_branch
      %672 = sbr.rel (0) target = $region25
    $region24: #{embedding_net.1} parent=1 // pred_region
      %s674 = ssub.s32 256, 256
      %675 = vsyncadd [#allocation3], %s674
      %s676 = sshll.u32 [#allocation2], 4
      %s677 = int_to_ptr.vmem [resolvable:$true] %s676
      %682 = dma.vmem_to_hbm [thread:$0]  %s677, 256, %s5, [#allocation3], 128, 128, 8
    $region25: #{embedding_net.1} parent=1 // pred_fallthru
      _
    // Predicated region
    $region26: #{embedding_net.1} parent=1 // pred_check
      _
    $region27: #{embedding_net.1} parent=1 // pred_check_branch
      %684 = sbr.rel (0) target = $region29
    $region28: #{embedding_net.1} parent=1 // pred_region
      %685 = dma.done [#allocation3], 256
    $region29: #{embedding_net.1} parent=1 // pred_fallthru
      _
    %686 = vsyncpa [#allocation3], 1

</llo_original>
